<compile_context>
chip_gen: v6e
topology: v6e:2x2x1
jax: 0.10.0
libtpu: 0.0.40
codegen_flags: <defaults>
</compile_context>

<pallas_src>
import functools
import math

import numpy as np
import jax
import jax.numpy as jnp
from jax.experimental import pallas as pl
from jax.experimental.pallas import tpu as pltpu


# --------------------------------------------------------------------------- #
# Kernels
# --------------------------------------------------------------------------- #
def _supermask_kernel_3d(dl_ref, table_ref, act_ref, out_ref, *, num_domains):
    """Used when c % 128 == 0 (already lane-dense).
    Blocks: dl (1, bs, 1) int32 (VMEM-resident), table (nd, rows, c),
            act / out (rows, bs, c)."""
    dl = dl_ref[...]                                    # (1, bs, 1)
    mask = table_ref[0][:, None, :]                     # (rows, 1, c)
    for d in range(1, num_domains):                     # small, unrolled selects
        mask = jnp.where(dl == d, table_ref[d][:, None, :], mask)
    out_ref[...] = mask * act_ref[...]


def _supermask_kernel_lanefold(dl_ref, table_ref, act_ref, out_ref, *,
                               num_domains, bs):
    """Lane-dense variant for small c: batch folded into the lane axis.
    Blocks: dl (1, bs*c) int32 per-lane domain id (resident),
            table (nd, rows, c), act / out (rows, bs*c)."""
    dl = dl_ref[...]                                    # (1, bs*c)

    def lane_tile(d):
        row = table_ref[d]                              # (rows, c)
        if bs == 1:
            return row
        # minor-axis concat (same op class as RoPE half-swaps) -> (rows, bs*c)
        return jnp.concatenate([row] * bs, axis=-1)

    mask = lane_tile(0)
    for d in range(1, num_domains):
        mask = jnp.where(dl == d, lane_tile(d), mask)
    out_ref[...] = mask * act_ref[...]


# --------------------------------------------------------------------------- #
# Tiling
# --------------------------------------------------------------------------- #
def _pick_block_rows(na, bs, c, num_domains, act_itemsize, table_itemsize,
                     sublane_mult, working_set_budget=24 << 20):
    """Rows of the leading `na` axis per grid step.

    Accounts for ALL double-buffered buffers (act in + out + table tile) and
    guarantees >= 4 grid steps (>= 2 for small na) with an even step count so
    the software pipeline overlaps and v7x can split the axis over its 2 TCs.
    The ~24 MiB working-set budget (plus the <=48 MiB vmem limit below) fits
    every generation: v5e/v6e 128 MiB physical VMEM, v7x 64 MiB physical.
    """
    if na <= sublane_mult:
        return na
    # Double-buffered bytes per row of the na axis.
    row_bytes = 2 * (2 * bs * c * act_itemsize + num_domains * c * table_itemsize)
    rows_budget = max(sublane_mult,
                      (working_set_budget // row_bytes) // sublane_mult * sublane_mult)
    # Minimum step count for DMA/compute/writeback overlap (+ v7x TC sharding).
    if na >= 4 * sublane_mult:
        min_steps = 4
    elif na >= 2 * sublane_mult:
        min_steps = 2
    else:
        min_steps = 1
    steps = max(min_steps, pl.cdiv(na, rows_budget))
    if steps > 1 and steps % 2:
        steps += 1                      # even step count -> both v7x TCs busy
    block_rows = pl.cdiv(pl.cdiv(na, steps), sublane_mult) * sublane_mult
    # Note: a ragged last block (na % block_rows != 0) is handled by Pallas'
    # edge-block padding; the kernel is purely elementwise so padded lanes are
    # harmless.
    return min(na, block_rows)


# --------------------------------------------------------------------------- #
# Wrapper
# --------------------------------------------------------------------------- #
def supermask_forward(activation, targets, super_mask_logits, domain_list,
                      mode="softscale", block_rows=None):
    """activation: (na, bs, c); targets: (bs,) int; logits: (num_domains, na, c).

    Equivalent (in the original (na, bs, c) layout) to the PyTorch
    permute -> per-sample-mask multiply -> permute forward.
    """
    na, bs, c = activation.shape
    num_domains = super_mask_logits.shape[0]
    assert super_mask_logits.shape == (num_domains, na, c)

    # --- class -> domain glue: one static LUT + a single gather.
    num_classes = max(max(labels) for labels in domain_list) + 1
    lut = np.zeros((num_classes,), dtype=np.int32)
    for d, labels in enumerate(domain_list):
        for l in labels:
            lut[l] = d
    domain_label = jnp.asarray(lut)[targets.astype(jnp.int32)]          # (bs,)

    # --- per-domain mask table, computed once (all transcendental work hoisted
    #     out of the kernel; (logits > 0) == (sigmoid(logits) > 0.5)).
    logits_f32 = super_mask_logits.astype(jnp.float32)
    if mode == "softscale":
        table = jax.nn.sigmoid(logits_f32)
    elif mode == "greedy":
        table = (logits_f32 > 0.0).astype(jnp.float32)
    elif mode == "avg_mask_softscale":
        table = jnp.mean(jax.nn.sigmoid(logits_f32), axis=0, keepdims=True)
        domain_label = jnp.zeros_like(domain_label)
        num_domains = 1
    else:
        raise NotImplementedError(
            f"mode={mode!r} is not implemented in the Pallas kernel")

    # Keep the whole datapath in the activation dtype (halves table DMA/VMEM
    # for bf16 activations on v6e/v7x).
    # TODO(synk): on v5e (no bf16 VPU) keep an f32 table for bf16 activations.
    table = table.astype(activation.dtype)

    act_itemsize = activation.dtype.itemsize
    sublane_mult = max(8, 32 // act_itemsize)        # 8 f32 / 16 bf16 / 32 int8

    if block_rows is None:
        block_rows = _pick_block_rows(na, bs, c, num_domains, act_itemsize,
                                      table.dtype.itemsize, sublane_mult)
    grid = (pl.cdiv(na, block_rows),)

    # Explicit scoped-VMEM limit sized from the real double-buffered footprint,
    # capped at 48 MiB (< v7x's 64 MiB physical; well under v5e/v6e's 128 MiB).
    act_tile = block_rows * bs * c * act_itemsize
    table_tile = num_domains * block_rows * c * table.dtype.itemsize
    footprint = 2 * (2 * act_tile + table_tile) + bs * c * 4
    vmem_limit = int(min(48 << 20, max(2 * footprint, 32 << 20)))

    compiler_params = pltpu.CompilerParams(
        dimension_semantics=("parallel",),   # na-axis shards across v7x TCs
        vmem_limit_bytes=vmem_limit)

    lane_fold = (c % 128 != 0) and bs > 1
    if lane_fold:
        # Fold batch into the lane axis so stores are lane-dense even for small
        # c.  Both reshapes below are free views (row-major contiguous).
        act2 = activation.reshape(na, bs * c)
        dl_lane = jnp.repeat(domain_label, c).reshape(1, bs * c)
        kernel = functools.partial(_supermask_kernel_lanefold,
                                   num_domains=num_domains, bs=bs)
        out2 = pl.pallas_call(
            kernel,
            out_shape=jax.ShapeDtypeStruct((na, bs * c), activation.dtype),
            grid=grid,
            in_specs=[
                # per-lane domain id: constant index_map -> VMEM-resident.
                pl.BlockSpec((1, bs * c), lambda i: (0, 0)),
                # per-domain mask rows for this na-tile (read from HBM once).
                pl.BlockSpec((num_domains, block_rows, c), lambda i: (0, i, 0)),
                # activation tile for this na-tile.
                pl.BlockSpec((block_rows, bs * c), lambda i: (i, 0)),
            ],
            out_specs=pl.BlockSpec((block_rows, bs * c), lambda i: (i, 0)),
            compiler_params=compiler_params,
        )(dl_lane, table, act2)
        return out2.reshape(na, bs, c)

    dl3 = domain_label.reshape(1, bs, 1)
    kernel = functools.partial(_supermask_kernel_3d, num_domains=num_domains)
    return pl.pallas_call(
        kernel,
        out_shape=jax.ShapeDtypeStruct((na, bs, c), activation.dtype),
        grid=grid,
        in_specs=[
            pl.BlockSpec((1, bs, 1), lambda i: (0, 0, 0)),        # resident
            pl.BlockSpec((num_domains, block_rows, c), lambda i: (0, i, 0)),
            pl.BlockSpec((block_rows, bs, c), lambda i: (i, 0, 0)),
        ],
        out_specs=pl.BlockSpec((block_rows, bs, c), lambda i: (i, 0, 0)),
        compiler_params=compiler_params,
    )(dl3, table, activation)


# --------------------------------------------------------------------------- #
# Reference + test
# --------------------------------------------------------------------------- #
def _reference(activation, targets, logits, domain_list, mode):
    # Pure-JAX mirror of the PyTorch forward (permute / mask / permute).
    num_classes = max(max(labels) for labels in domain_list) + 1
    lut = np.zeros((num_classes,), dtype=np.int32)
    for d, labels in enumerate(domain_list):
        for l in labels:
            lut[l] = d
    domain_label = jnp.asarray(lut)[targets.astype(jnp.int32)]
    act = jnp.transpose(activation, (1, 0, 2))                    # (bs, na, c)
    probs = jax.nn.sigmoid(logits.astype(jnp.float32))
    if mode == "softscale":
        mask = probs[domain_label]
    elif mode == "greedy":
        mask = (probs[domain_label] > 0.5).astype(jnp.float32)
    elif mode == "avg_mask_softscale":
        mask = jnp.broadcast_to(jnp.mean(probs, axis=0), act.shape)
    else:
        raise NotImplementedError(mode)
    return jnp.transpose(mask * act, (1, 0, 2))


if __name__ == "__main__":
    key = jax.random.PRNGKey(0)
    k_act, k_logits, k_tgt, k_act2, k_logits2 = jax.random.split(key, 5)

    domain_list = [[0, 1], [2, 3]]
    num_domains = len(domain_list)

    # Case 1: small channel count (c=32) -> lane-folded path (bs*c = 128 lanes),
    # default tiling gives a 4-step pipelined grid over na.
    na, bs, c = 32, 4, 32
    activation = jax.random.normal(k_act, (na, bs, c), dtype=jnp.float32)
    targets = jax.random.randint(k_tgt, (bs,), 0, 4, dtype=jnp.int32)
    xavier_std = math.sqrt(2.0 / (na + c))      # init_setting == 'random_uniform'
    logits = (jax.random.normal(k_logits, (num_domains, na, c), jnp.float32)
              * xavier_std)

    for mode in ("softscale", "greedy", "avg_mask_softscale"):
        ref = _reference(activation, targets, logits, domain_list, mode)
        out = jax.block_until_ready(
            supermask_forward(activation, targets, logits, domain_list, mode))
        assert out.shape == (na, bs, c)
        assert jnp.allclose(out, ref, atol=1e-5, rtol=1e-5), mode
        # Forced coarser tiling to exercise a different grid split.
        out_t = jax.block_until_ready(
            supermask_forward(activation, targets, logits, domain_list, mode,
                              block_rows=16))
        assert jnp.allclose(out_t, ref, atol=1e-5, rtol=1e-5), mode

    # Case 2: lane-dense channel count (c=128) -> direct 3-D block path.
    na2, bs2, c2 = 16, 4, 128
    activation2 = jax.random.normal(k_act2, (na2, bs2, c2), dtype=jnp.float32)
    logits2 = (jax.random.normal(k_logits2, (num_domains, na2, c2), jnp.float32)
               * math.sqrt(2.0 / (na2 + c2)))
    for mode in ("softscale", "greedy"):
        ref = _reference(activation2, targets, logits2, domain_list, mode)
        out = jax.block_until_ready(
            supermask_forward(activation2, targets, logits2, domain_list, mode))
        assert out.shape == (na2, bs2, c2)
        assert jnp.allclose(out, ref, atol=1e-5, rtol=1e-5), mode

    print("KERNEL_OK")
</pallas_src>

<mosaic_0001>
module attributes {stable_mosaic.version = 11 : i64} {
  func.func @_supermask_kernel_lanefold(%arg0: i32, %arg1: memref<1x128xi32, #tpu.memory_space<vmem>>, %arg2: memref<2x8x32xf32, #tpu.memory_space<vmem>>, %arg3: memref<8x128xf32, #tpu.memory_space<vmem>>, %arg4: memref<8x128xf32, #tpu.memory_space<vmem>>) attributes {dimension_semantics = [#tpu.dimension_semantics<parallel>], iteration_bounds = array<i64: 4>, scalar_prefetch = 0 : i64, scratch_operands = 0 : i64, tpu.core_type = #tpu.core_type<tc>, window_params = [{pipeline_mode = #tpu.pipeline_mode<synchronous>, transform_indices = @transform_0, window_bounds = array<i64: 1, 128>}, {transform_indices = @transform_1, window_bounds = array<i64: 2, 8, 32>}, {transform_indices = @transform_2, window_bounds = array<i64: 8, 128>}, {transform_indices = @transform_3, window_bounds = array<i64: 8, 128>}]} {
    %c0 = arith.constant 0 : index
    %c0_0 = arith.constant 0 : index
    %0 = vector.load %arg1[%c0, %c0_0] : memref<1x128xi32, #tpu.memory_space<vmem>>, vector<1x128xi32>
    %c0_1 = arith.constant 0 : index
    %c0_2 = arith.constant 0 : index
    %c0_3 = arith.constant 0 : index
    %1 = vector.load %arg2[%c0_1, %c0_2, %c0_3] : memref<2x8x32xf32, #tpu.memory_space<vmem>>, vector<1x8x32xf32>
    %2 = vector.shape_cast %1 : vector<1x8x32xf32> to vector<8x32xf32>
    %3 = tpu.concatenate %2, %2, %2, %2 in 1 : vector<8x32xf32>, vector<8x32xf32>, vector<8x32xf32>, vector<8x32xf32> -> vector<8x128xf32>
    %c1_i32 = arith.constant 1 : i32
    %4 = vector.broadcast %c1_i32 : i32 to vector<1x128xi32>
    %5 = arith.cmpi eq, %0, %4 : vector<1x128xi32>
    %c1 = arith.constant 1 : index
    %c0_4 = arith.constant 0 : index
    %c0_5 = arith.constant 0 : index
    %6 = vector.load %arg2[%c1, %c0_4, %c0_5] : memref<2x8x32xf32, #tpu.memory_space<vmem>>, vector<1x8x32xf32>
    %7 = vector.shape_cast %6 : vector<1x8x32xf32> to vector<8x32xf32>
    %8 = tpu.concatenate %7, %7, %7, %7 in 1 : vector<8x32xf32>, vector<8x32xf32>, vector<8x32xf32>, vector<8x32xf32> -> vector<8x128xf32>
    %9 = vector.shape_cast %5 : vector<1x128xi1> to vector<1x128xi1>
    %10 = vector.broadcast %9 : vector<1x128xi1> to vector<8x128xi1>
    %11 = arith.select %10, %8, %3 : vector<8x128xi1>, vector<8x128xf32>
    %c0_6 = arith.constant 0 : index
    %c0_7 = arith.constant 0 : index
    %12 = vector.load %arg3[%c0_6, %c0_7] : memref<8x128xf32, #tpu.memory_space<vmem>>, vector<8x128xf32>
    %13 = arith.mulf %11, %12 : vector<8x128xf32>
    %c0_8 = arith.constant 0 : index
    %c0_9 = arith.constant 0 : index
    %14 = vector.load %arg4[%c0_8, %c0_9] : memref<8x128xf32, #tpu.memory_space<vmem>>, vector<8x128xf32>
    tpu.vector_store %arg4[%c0_8, %c0_9], %13 {strides = array<i32>} : memref<8x128xf32, #tpu.memory_space<vmem>>, vector<8x128xf32>,
    return
  }
  func.func @transform_0(%arg0: i32) -> (i32, i32) {
    %c0_i32 = arith.constant 0 : i32
    %c0_i32_0 = arith.constant 0 : i32
    %c0_i32_1 = arith.constant 0 : i32
    return %c0_i32, %c0_i32_0 : i32, i32
  }
  func.func @transform_1(%arg0: i32) -> (i32, i32, i32) {
    %c0_i32 = arith.constant 0 : i32
    %c0_i32_0 = arith.constant 0 : i32
    %c0_i32_1 = arith.constant 0 : i32
    return %c0_i32, %arg0, %c0_i32_0 : i32, i32, i32
  }
  func.func @transform_2(%arg0: i32) -> (i32, i32) {
    %c0_i32 = arith.constant 0 : i32
    %c0_i32_0 = arith.constant 0 : i32
    return %arg0, %c0_i32 : i32, i32
  }
  func.func @transform_3(%arg0: i32) -> (i32, i32) {
    %c0_i32 = arith.constant 0 : i32
    %c0_i32_0 = arith.constant 0 : i32
    return %arg0, %c0_i32 : i32, i32
  }
}

</mosaic_0001>

<llo_original>
// kernel: tpu_custom_call.1
$region0: #{tpu_custom_call.1}
  #allocation0 [shape = 'u32[]', space=smem, size = 0x4, offset = 0x4, fixed_abs, tag = 'smem constant byte address 0x4 - core index']
  #allocation1 [shape = 'u32[144,128]{1,0:T(1,128)}', space=vmem, size = 0x12000, scoped, tag = 'internal scratch']
  %s0 = inlined_call_operand.hbm [shape: s32[1,128], index: 0, kind: input, shape index: {}]
  %s1 = inlined_call_operand.hbm [shape: f32[2,32,32], index: 1, kind: input, shape index: {}]
  %s2 = inlined_call_operand.hbm [shape: f32[32,128], index: 2, kind: input, shape index: {}]
  %s3 = inlined_call_operand.hbm [shape: f32[32,128], index: 3, kind: output, shape index: {}]
  %s4 = sld [smem:[#allocation0]]
  $region57: #{tpu_custom_call.1} parent=0
    _
  %s6 = ssub.s32 1, %s4
  %s7 = scalar_select 0, %s6, %s4
  $region1: #{tpu_custom_call.1} parent=0
    #allocation2 [shape = 'u8[512]{0}', space=vmem, size = 0x400, scoped, tag = 'input window, operand 0, single buffered']
    #allocation3 [shape = 's32[2]{0}', space=sflag, size = 0x8, scoped, tag = 'scoped memory for tpu_custom_call.1']
    #allocation4 [shape = 's32[2]{0}', space=sflag, size = 0x8, scoped, tag = 'scoped memory for tpu_custom_call.1']
    #allocation5 [shape = 'u8[16384]{0}', space=vmem, size = 0x4000, scoped, tag = 'input window, operand 1']
    #allocation6 [shape = 's32[2]{0}', space=sflag, size = 0x8, scoped, tag = 'scoped memory for tpu_custom_call.1']
    #allocation7 [shape = 'u8[8192]{0}', space=vmem, size = 0x2000, scoped, tag = 'input window, operand 2']
    #allocation8 [shape = 'u8[8192]{0}', space=vmem, size = 0x2000, scoped, tag = 'output window, operand 0']
    %8 = vsyncpa [#allocation3], 0
    %9 = vsyncpa [#allocation6], 0
    %s10 = scalar_lea.sflag [#allocation6], 1
    %11 = vsyncpa %s10, 0
    %12 = vsyncpa [#allocation4], 0
    %s13 = scalar_lea.sflag [#allocation4], 1
    %14 = vsyncpa %s13, 0
    loop: start=0, step=1, limit=6
    $region2: #{tpu_custom_call.1} parent=1 // loop_pre_header
      _
    $region3: #{tpu_custom_call.1} parent=1 // loop_header
      %s16 = sphi 0, %s20
      %p17 = scmp.ge.s32.totalorder %s16, 6
      %s24 = sphi 0, %s24
      %s26 = sphi 0, %s24
      %s27 = sphi 0, %s26
      %s41 = sphi 0, %s27
      %s47 = sphi 0, %s49
      %s50 = sphi 0, %s47
      %s51 = sphi 0, %s50
      %s67 = sphi 0, %s51
      %s73 = sphi 0, %s75
      %s76 = sphi 0, %s73
      %s77 = sphi 0, %s76
      %s93 = sphi 0, %s77
      %s99 = sphi 0, %s101
      %s102 = sphi 0, %s99
      %s103 = sphi 0, %s102
      %s119 = sphi 0, %s103
    $region4: #{tpu_custom_call.1} parent=1 // loop_header_branch
      %19 = sbr.rel (%p17) target = $region8
    $region5: #{tpu_custom_call.1} parent=1 // loop_body
      %s21 = ssub.s32 %s16, 1
      %s22 = ssub.s32 %s16, 2
      %s23 = sadd.s32 %s16, 1
      %s25 = sadd.s32 %s24, 1
      %p28 = scmp.eq.s32.totalorder %s16, 3
      %p29 = scmp.ne.s32.totalorder %s24, %s26
      %p30 = scmp.eq.s32.totalorder %s16, 0
      %p31 = por %p29, %p30
      %p32 = scmp.ne.s32.totalorder %s24, %s26
      %p33 = scmp.eq.s32.totalorder %s21, 3
      %p34 = por %p32, %p33
      %p35 = scmp.ne.s32.totalorder %s26, %s27
      %p36 = scmp.eq.s32.totalorder %s21, 0
      %p37 = por %p35, %p36
      %p38 = scmp.ne.s32.totalorder %s26, %s27
      %p39 = scmp.eq.s32.totalorder %s22, 3
      %p40 = por %p38, %p39
      %p42 = scmp.ne.s32.totalorder %s27, %s41
      %p43 = scmp.eq.s32.totalorder %s22, 0
      %p44 = por %p42, %p43
      %s45 = ssub.s32 %s16, %s23
      %p46 = scmp.eq.s32.totalorder %s45, 0
      %s48 = sadd.s32 %s47, 1
      %s49 = scalar_select %p46, %s47, %s48
      %p52 = pneg %p46
      %p53 = scmp.eq.s32.totalorder %s16, 3
      %p54 = por %p52, %p53
      %p55 = scmp.ne.s32.totalorder %s47, %s50
      %p56 = scmp.eq.s32.totalorder %s16, 0
      %p57 = por %p55, %p56
      %p58 = scmp.ne.s32.totalorder %s47, %s50
      %p59 = scmp.eq.s32.totalorder %s21, 3
      %p60 = por %p58, %p59
      %p61 = scmp.ne.s32.totalorder %s50, %s51
      %p62 = scmp.eq.s32.totalorder %s21, 0
      %p63 = por %p61, %p62
      %p64 = scmp.ne.s32.totalorder %s50, %s51
      %p65 = scmp.eq.s32.totalorder %s22, 3
      %p66 = por %p64, %p65
      %p68 = scmp.ne.s32.totalorder %s51, %s67
      %p69 = scmp.eq.s32.totalorder %s22, 0
      %p70 = por %p68, %p69
      %s71 = ssub.s32 %s16, %s23
      %p72 = scmp.eq.s32.totalorder %s71, 0
      %s74 = sadd.s32 %s73, 1
      %s75 = scalar_select %p72, %s73, %s74
      %p78 = pneg %p72
      %p79 = scmp.eq.s32.totalorder %s16, 3
      %p80 = por %p78, %p79
      %p81 = scmp.ne.s32.totalorder %s73, %s76
      %p82 = scmp.eq.s32.totalorder %s16, 0
      %p83 = por %p81, %p82
      %p84 = scmp.ne.s32.totalorder %s73, %s76
      %p85 = scmp.eq.s32.totalorder %s21, 3
      %p86 = por %p84, %p85
      %p87 = scmp.ne.s32.totalorder %s76, %s77
      %p88 = scmp.eq.s32.totalorder %s21, 0
      %p89 = por %p87, %p88
      %p90 = scmp.ne.s32.totalorder %s76, %s77
      %p91 = scmp.eq.s32.totalorder %s22, 3
      %p92 = por %p90, %p91
      %p94 = scmp.ne.s32.totalorder %s77, %s93
      %p95 = scmp.eq.s32.totalorder %s22, 0
      %p96 = por %p94, %p95
      %s97 = ssub.s32 %s16, %s23
      %p98 = scmp.eq.s32.totalorder %s97, 0
      %s100 = sadd.s32 %s99, 1
      %s101 = scalar_select %p98, %s99, %s100
      %p104 = pneg %p98
      %p105 = scmp.eq.s32.totalorder %s16, 3
      %p106 = por %p104, %p105
      %p107 = scmp.ne.s32.totalorder %s99, %s102
      %p108 = scmp.eq.s32.totalorder %s16, 0
      %p109 = por %p107, %p108
      %p110 = scmp.ne.s32.totalorder %s99, %s102
      %p111 = scmp.eq.s32.totalorder %s21, 3
      %p112 = por %p110, %p111
      %p113 = scmp.ne.s32.totalorder %s102, %s103
      %p114 = scmp.eq.s32.totalorder %s21, 0
      %p115 = por %p113, %p114
      %p116 = scmp.ne.s32.totalorder %s102, %s103
      %p117 = scmp.eq.s32.totalorder %s22, 3
      %p118 = por %p116, %p117
      %p120 = scmp.ne.s32.totalorder %s103, %s119
      %p121 = scmp.eq.s32.totalorder %s22, 0
      %p122 = por %p120, %p121
      %p123 = scmp.le.s32.totalorder 1, %s16
      %p124 = scmp.lt.s32.totalorder %s16, 5
      %p125 = pnand %p123, %p124
      %p126 = pneg %p125
      // Predicated region
      $region9: #{tpu_custom_call.1} parent=5 // pred_check
        _
      $region10: #{tpu_custom_call.1} parent=5 // pred_check_branch
        %128 = sbr.rel (%p125) target = $region12
      $region11: #{tpu_custom_call.1} parent=5 // pred_region
        %s129 = ssub.s32 %s16, 1
        // Predicated region
        $region13: #{tpu_custom_call.1} parent=11 // pred_check
          %p130 = pneg %p37
        $region14: #{tpu_custom_call.1} parent=11 // pred_check_branch
          %132 = sbr.rel (%p130) target = $region16
        $region15: #{tpu_custom_call.1} parent=11 // pred_region
          %s134 = ssub.s32 16, 16
          %135 = vsyncadd [#allocation3], %s134
          %s137 = sshll.u32 [#allocation2], 4
          %s138 = int_to_ptr.vmem [resolvable:$true] %s137
          %140 = dma.hbm_to_vmem [thread:$0]  %s0, 16, %s138, [#allocation3]
        $region16: #{tpu_custom_call.1} parent=11 // pred_fallthru
          _
      $region12: #{tpu_custom_call.1} parent=5 // pred_fallthru
        _
      %p141 = scmp.lt.s32.totalorder %s16, 4
      // Predicated region
      $region17: #{tpu_custom_call.1} parent=5 // pred_check
        %p142 = pneg %p141
      $region18: #{tpu_custom_call.1} parent=5 // pred_check_branch
        %144 = sbr.rel (%p142) target = $region20
      $region19: #{tpu_custom_call.1} parent=5 // pred_region
        // Predicated region
        $region21: #{tpu_custom_call.1} parent=19 // pred_check
          %p145 = pneg %p57
        $region22: #{tpu_custom_call.1} parent=19 // pred_check_branch
          %147 = sbr.rel (%p145) target = $region24
        $region23: #{tpu_custom_call.1} parent=19 // pred_region
          %s148 = sand.u32 %s16, 1
          %s149 = scalar_lea.sflag [#allocation6], %s148
          %s150 = sand.u32 %s47, 1
          %s151 = smul.addr %s150, 16
          %s152 = scalar_lea.vmem [#allocation5], %s151
          %s154 = ssub.s32 256, 256
          %155 = vsyncadd %s149, %s154
          %s156 = smul.addr %s16, 128
          %s157 = scalar_lea.hbm %s1, %s156
          %s158 = sshll.u32 %s152, 4
          %s159 = int_to_ptr.vmem [resolvable:$true] %s158
          %164 = dma.hbm_to_vmem [thread:$0]  %s157, 256, %s159, %s149, 512, 128, 8
        $region24: #{tpu_custom_call.1} parent=19 // pred_fallthru
          _
        // Predicated region
        $region25: #{tpu_custom_call.1} parent=19 // pred_check
          %p165 = pneg %p83
        $region26: #{tpu_custom_call.1} parent=19 // pred_check_branch
          %167 = sbr.rel (%p165) target = $region28
        $region27: #{tpu_custom_call.1} parent=19 // pred_region
          %s168 = sand.u32 %s16, 1
          %s169 = scalar_lea.sflag [#allocation6], %s168
          %s170 = sand.u32 %s73, 1
          %s171 = smul.addr %s170, 8
          %s172 = scalar_lea.vmem [#allocation7], %s171
          %s174 = ssub.s32 128, 128
          %175 = vsyncadd %s169, %s174
          %s176 = smul.addr %s16, 128
          %s177 = scalar_lea.hbm %s2, %s176
          %s179 = sshll.u32 %s172, 4
          %s180 = int_to_ptr.vmem [resolvable:$true] %s179
          %182 = dma.hbm_to_vmem [thread:$0]  %s177, 128, %s180, %s169
        $region28: #{tpu_custom_call.1} parent=19 // pred_fallthru
          _
      $region20: #{tpu_custom_call.1} parent=5 // pred_fallthru
        _
      %p183 = scmp.le.s32.totalorder 1, %s16
      %p184 = scmp.lt.s32.totalorder %s16, 5
      %p185 = pnand %p183, %p184
      %p186 = pneg %p185
      // Predicated region
      $region29: #{tpu_custom_call.1} parent=5 // pred_check
        _
      $region30: #{tpu_custom_call.1} parent=5 // pred_check_branch
        %188 = sbr.rel (%p185) target = $region32
      $region31: #{tpu_custom_call.1} parent=5 // pred_region
        %s189 = ssub.s32 %s16, 1
        // Predicated region
        $region33: #{tpu_custom_call.1} parent=31 // pred_check
          %p190 = pneg %p37
        $region34: #{tpu_custom_call.1} parent=31 // pred_check_branch
          %192 = sbr.rel (%p190) target = $region36
        $region35: #{tpu_custom_call.1} parent=31 // pred_region
          %193 = dma.done [#allocation3], 16
        $region36: #{tpu_custom_call.1} parent=31 // pred_fallthru
          _
        %s194 = sand.u32 %s21, 1
        %s195 = scalar_lea.sflag [#allocation6], %s194
        %s196 = sand.u32 %s50, 1
        %s197 = smul.addr %s196, 16
        %s198 = scalar_lea.vmem [#allocation5], %s197
        // Predicated region
        $region37: #{tpu_custom_call.1} parent=31 // pred_check
          %p199 = pneg %p63
        $region38: #{tpu_custom_call.1} parent=31 // pred_check_branch
          %201 = sbr.rel (%p199) target = $region40
        $region39: #{tpu_custom_call.1} parent=31 // pred_region
          %202 = dma.done %s195, 256
        $region40: #{tpu_custom_call.1} parent=31 // pred_fallthru
          _
        %s203 = sand.u32 %s21, 1
        %s204 = scalar_lea.sflag [#allocation6], %s203
        %s205 = sand.u32 %s76, 1
        %s206 = smul.addr %s205, 8
        %s207 = scalar_lea.vmem [#allocation7], %s206
        // Predicated region
        $region41: #{tpu_custom_call.1} parent=31 // pred_check
          %p208 = pneg %p89
        $region42: #{tpu_custom_call.1} parent=31 // pred_check_branch
          %210 = sbr.rel (%p208) target = $region44
        $region43: #{tpu_custom_call.1} parent=31 // pred_region
          %211 = dma.done %s204, 128
        $region44: #{tpu_custom_call.1} parent=31 // pred_fallthru
          _
        %p212 = pneg %p37
        %p213 = pneg %p34
        %s214 = sand.u32 %s21, 1
        %s215 = scalar_lea.sflag [#allocation6], %s214
        %s216 = sand.u32 %s50, 1
        %s217 = smul.addr %s216, 16
        %s218 = scalar_lea.vmem [#allocation5], %s217
        %p219 = pneg %p63
        %p220 = pneg %p60
        %s221 = sand.u32 %s21, 1
        %s222 = scalar_lea.sflag [#allocation6], %s221
        %s223 = sand.u32 %s76, 1
        %s224 = smul.addr %s223, 8
        %s225 = scalar_lea.vmem [#allocation7], %s224
        %p226 = pneg %p89
        %p227 = pneg %p86
        %p228 = pneg %p115
        %p229 = pneg %p112
        %s230 = sand.u32 %s102, 1
        %s231 = scalar_lea.sflag [#allocation4], %s230
        %s232 = sand.u32 %s102, 1
        %s233 = smul.addr %s232, 8
        %s234 = scalar_lea.vmem [#allocation8], %s233
        %v235 = vld [vmem:[#allocation2] sm:$0x1]
        %v236 = vld [vmem:[%s198] sm:$0xff]
        %238 = vrot.lane.b32.xlu0 %v236, 32
        %v239 = vpop.permute.xlu0 %238
        %241 = vrot.lane.b32.xlu0 %v236, 64
        %v242 = vpop.permute.xlu0 %241
        %244 = vrot.lane.b32.xlu0 %v236, 96
        %v245 = vpop.permute.xlu0 %244
        %vm247 = vcmask 261120
        %v248 = vsel %vm247, %v236, %v239
        %vm249 = vcmask 523264
        %v250 = vsel %vm249, %v248, %v242
        %vm251 = vcmask 785408
        %v252 = vsel %vm251, %v250, %v245
        %vm253 = vcmp.eq.s32.totalorder %v235, 1
        %s254 = scalar_lea.vmem %s198, 8 [#allocation5]
        %v255 = vld [vmem:[%s254] sm:$0xff]
        %257 = vrot.lane.b32.xlu0 %v255, 32
        %v258 = vpop.permute.xlu0 %257
        %260 = vrot.lane.b32.xlu0 %v255, 64
        %v261 = vpop.permute.xlu0 %260
        %263 = vrot.lane.b32.xlu0 %v255, 96
        %v264 = vpop.permute.xlu0 %263
        %v266 = vsel %vm247, %v255, %v258
        %v267 = vsel %vm249, %v266, %v261
        %v268 = vsel %vm251, %v267, %v264
        %v269 = vsel %vm253, 1, 0
        %v270 = vlaneseq
        %v271 = vshrl.u32 %v270, 7
        %v272 = vsub.s32 0, %v271
        %v273 = vrot.slane %v269, %v272
        %vm274 = vcmp.eq.s32.totalorder %v273, 1
        %v275 = vsel %vm274, %v268, %v252
        %v276 = vld [vmem:[%s207] sm:$0xff]
        %v277 = vmul.f32 %v275, %v276
        %278 = vst [vmem:[%s234] sm:$0xff] %v277
        %s279 = sand.u32 %s102, 1
        %s280 = scalar_lea.sflag [#allocation4], %s279
        %s281 = sand.u32 %s102, 1
        %s282 = smul.addr %s281, 8
        %s283 = scalar_lea.vmem [#allocation8], %s282
        // Predicated region
        $region45: #{tpu_custom_call.1} parent=31 // pred_check
          %p284 = pneg %p112
        $region46: #{tpu_custom_call.1} parent=31 // pred_check_branch
          %286 = sbr.rel (%p284) target = $region48
        $region47: #{tpu_custom_call.1} parent=31 // pred_region
          %s288 = ssub.s32 128, 128
          %289 = vsyncadd %s280, %s288
          %s290 = smul.addr %s21, 128
          %s291 = scalar_lea.hbm %s3, %s290
          %s293 = sshll.u32 %s283, 4
          %s294 = int_to_ptr.vmem [resolvable:$true] %s293
          %296 = dma.vmem_to_hbm [thread:$0]  %s294, 128, %s291, %s280
        $region48: #{tpu_custom_call.1} parent=31 // pred_fallthru
          _
      $region32: #{tpu_custom_call.1} parent=5 // pred_fallthru
        _
      %p297 = scmp.le.s32.totalorder 2, %s16
      // Predicated region
      $region49: #{tpu_custom_call.1} parent=5 // pred_check
        %p298 = pneg %p297
      $region50: #{tpu_custom_call.1} parent=5 // pred_check_branch
        %300 = sbr.rel (%p298) target = $region52
      $region51: #{tpu_custom_call.1} parent=5 // pred_region
        %s301 = ssub.s32 %s16, 2
        // Predicated region
        $region53: #{tpu_custom_call.1} parent=51 // pred_check
          %p302 = pneg %p118
        $region54: #{tpu_custom_call.1} parent=51 // pred_check_branch
          %304 = sbr.rel (%p302) target = $region56
        $region55: #{tpu_custom_call.1} parent=51 // pred_region
          %s305 = sand.u32 %s103, 1
          %s306 = scalar_lea.sflag [#allocation4], %s305
          %s307 = sand.u32 %s103, 1
          %s308 = smul.addr %s307, 8
          %s309 = scalar_lea.vmem [#allocation8], %s308
          %310 = dma.done %s306, 128
        $region56: #{tpu_custom_call.1} parent=51 // pred_fallthru
          _
      $region52: #{tpu_custom_call.1} parent=5 // pred_fallthru
        _
    $region6: #{tpu_custom_call.1} parent=1 // loop_footer
      %s20 = sadd.s32 1, %s16
    $region7: #{tpu_custom_call.1} parent=1 // loop_footer_branch
      %15 = sbr.rel target = $region3
    $region8: #{tpu_custom_call.1} parent=1 // loop_exit
      _
    %311 = vsyncpa [#allocation3], 1
    %s312 = scalar_lea.sflag [#allocation3], 1
    %313 = vsyncpa %s312, 1
    %314 = vsyncpa [#allocation6], 1
    %s315 = scalar_lea.sflag [#allocation6], 1
    %316 = vsyncpa %s315, 1
    %317 = vsyncpa [#allocation4], 1
    %s318 = scalar_lea.sflag [#allocation4], 1
    %319 = vsyncpa %s318, 1

</llo_original>
